<compile_context>
chip_gen: v5e
topology: v5e:2x2
jax: 0.10.0
libtpu: 0.0.40
codegen_flags: <defaults>
</compile_context>

<pallas_src>
import jax
import jax.numpy as jnp
from jax.experimental import pallas as pl
from jax.experimental.pallas import tpu as pltpu


def policy_kernel(x_ref, w1t_ref, b1_ref, w2t_ref, b2_ref, out_ref):
    # x_ref:   (s_size, TILE_B)   activations, batch on lanes
    # w1t_ref: (h_size, s_size)   fc1 weight, transposed
    # b1_ref:  (h_size, 1)
    # w2t_ref: (a_size, h_size)   fc2 weight, transposed
    # b2_ref:  (a_size, 1)
    # out_ref: (a_size, TILE_B)
    x_t = x_ref[...]

    # fc1 + ReLU on the MXU: (h_size, s_size) @ (s_size, TILE_B)
    h = jnp.dot(w1t_ref[...], x_t, preferred_element_type=jnp.float32)
    h = jnp.maximum(h + b1_ref[...], 0.0)

    # fc2 on the MXU: (a_size, h_size) @ (h_size, TILE_B)
    logits = jnp.dot(w2t_ref[...], h, preferred_element_type=jnp.float32)
    logits = logits + b2_ref[...]

    # Numerically-stable softmax over the action axis (axis=0), exact division.
    m = jnp.max(logits, axis=0, keepdims=True)
    e = jnp.exp(logits - m)
    denom = jnp.sum(e, axis=0, keepdims=True)
    out_ref[...] = e / denom


def _round_up(n, m):
    return ((n + m - 1) // m) * m


def _choose_tiling(batch, tile_b_max):
    """Returns (b_pad, tile_b, grid_len): tile_b a multiple of 128, at most
    ~tile_b_max, with >= 2 grid steps whenever batch spans > 128 columns
    (feeds both v7x TensorCores)."""
    b_pad = _round_up(max(batch, 1), 128)
    n_lane_tiles = b_pad // 128
    g = max(pl.cdiv(b_pad, tile_b_max), min(2, n_lane_tiles))
    tile_b = _round_up(pl.cdiv(b_pad, g), 128)
    g = pl.cdiv(b_pad, tile_b)
    return g * tile_b, tile_b, g


def policy_forward(x, w1, b1, w2, b2, *, tile_b_max=32768, prefer_pallas=None):
    """x: (B, s_size); w1: (s_size, h_size); b1: (1, h_size);
    w2: (h_size, a_size); b2: (1, a_size). Returns (B, a_size) probabilities."""
    B, s_size = x.shape
    h_size = w1.shape[1]
    a_size = w2.shape[1]

    if prefer_pallas is None:
        prefer_pallas = B >= 1024
    if not prefer_pallas:
        # Tiny RL-style batches: XLA path is strictly faster than the
        # pad/transpose + pallas_call fixed cost.
        h = jnp.maximum(x @ w1 + b1, 0.0)
        return jax.nn.softmax(h @ w2 + b2, axis=1)

    b_pad, tile_b, grid_len = _choose_tiling(B, tile_b_max)

    # Feature-major layout: batch on the lane (last) axis.
    x_t = jnp.pad(x.T, ((0, 0), (0, b_pad - B)))          # (s_size, b_pad)
    w1_t = w1.T                                           # (h_size, s_size)
    b1_t = b1.reshape(h_size, 1)                          # (h_size, 1)
    w2_t = w2.T                                           # (a_size, h_size)
    b2_t = b2.reshape(a_size, 1)                          # (a_size, 1)

    cost = pl.CostEstimate(
        flops=2 * B * (s_size * h_size + h_size * a_size),
        transcendentals=B * a_size,
        bytes_accessed=4 * (B * s_size + s_size * h_size + h_size
                            + h_size * a_size + a_size + B * a_size),
    )

    out_t = pl.pallas_call(
        policy_kernel,
        out_shape=jax.ShapeDtypeStruct((a_size, b_pad), jnp.float32),
        grid=(grid_len,),
        in_specs=[
            pl.BlockSpec((s_size, tile_b), lambda i: (0, i)),     # x tile
            pl.BlockSpec((h_size, s_size), lambda i: (0, 0)),     # w1^T resident
            pl.BlockSpec((h_size, 1), lambda i: (0, 0)),          # b1 resident
            pl.BlockSpec((a_size, h_size), lambda i: (0, 0)),     # w2^T resident
            pl.BlockSpec((a_size, 1), lambda i: (0, 0)),          # b2 resident
        ],
        out_specs=pl.BlockSpec((a_size, tile_b), lambda i: (0, i)),
        compiler_params=pltpu.CompilerParams(
            dimension_semantics=("parallel",)),
        cost_estimate=cost,
    )(x_t, w1_t, b1_t, w2_t, b2_t)

    return out_t[:, :B].T                                 # back to (B, a_size)


def init_params(key, s_size, h_size, a_size):
    # PyTorch Linear-style uniform(-1/sqrt(fan_in), 1/sqrt(fan_in)) init.
    k1, k2, k3, k4 = jax.random.split(key, 4)
    bound1 = 1.0 / jnp.sqrt(jnp.float32(s_size))
    bound2 = 1.0 / jnp.sqrt(jnp.float32(h_size))
    w1 = jax.random.uniform(k1, (s_size, h_size), jnp.float32, -bound1, bound1)
    b1 = jax.random.uniform(k2, (1, h_size), jnp.float32, -bound1, bound1)
    w2 = jax.random.uniform(k3, (h_size, a_size), jnp.float32, -bound2, bound2)
    b2 = jax.random.uniform(k4, (1, a_size), jnp.float32, -bound2, bound2)
    return w1, b1, w2, b2


if __name__ == "__main__":
    # Shapes implied by the module: s_size=3, a_size=len(eq_user_input)=6.
    s_size, a_size, h_size = 3, 6, 32

    key = jax.random.PRNGKey(0)
    k_x, k_x2, k_p = jax.random.split(key, 3)
    w1, b1, w2, b2 = init_params(k_p, s_size, h_size, a_size)

    def reference(xx):
        h_ref = jnp.maximum(xx @ w1 + b1, 0.0)
        return jax.nn.softmax(h_ref @ w2 + b2, axis=1)

    # 1) Small RL-style batch, forced through the Pallas kernel.
    x_small = jax.random.normal(k_x, (2, s_size), jnp.float32)
    p_small = policy_forward(x_small, w1, b1, w2, b2, prefer_pallas=True)
    p_small = jax.block_until_ready(p_small)
    assert p_small.shape == (2, a_size)
    assert jnp.allclose(p_small, reference(x_small), atol=1e-5, rtol=1e-5)
    assert jnp.allclose(jnp.sum(p_small, axis=1), 1.0, atol=1e-5)

    # 2) Larger batch exercising multi-step grid + lane-padding tail.
    x_big = jax.random.normal(k_x2, (4133, s_size), jnp.float32)
    p_big = policy_forward(x_big, w1, b1, w2, b2, prefer_pallas=True)
    p_big = jax.block_until_ready(p_big)
    assert p_big.shape == (4133, a_size)
    assert jnp.allclose(p_big, reference(x_big), atol=1e-5, rtol=1e-5)
    assert jnp.allclose(jnp.sum(p_big, axis=1), 1.0, atol=1e-5)

    # TODO(synk): Policy.act's Categorical sampling / log_prob is host-side RL
    # plumbing (not part of the module's forward) and is not implemented here.
    print("KERNEL_OK")
</pallas_src>

<mosaic_0001>
module attributes {stable_mosaic.version = 11 : i64} {
  func.func @policy_kernel(%arg0: i32, %arg1: memref<3x128xf32, #tpu.memory_space<vmem>>, %arg2: memref<32x3xf32, #tpu.memory_space<vmem>>, %arg3: memref<32x1xf32, #tpu.memory_space<vmem>>, %arg4: memref<6x32xf32, #tpu.memory_space<vmem>>, %arg5: memref<6x1xf32, #tpu.memory_space<vmem>>, %arg6: memref<6x128xf32, #tpu.memory_space<vmem>>) attributes {dimension_semantics = [#tpu.dimension_semantics<parallel>], iteration_bounds = array<i64: 1>, scalar_prefetch = 0 : i64, scratch_operands = 0 : i64, tpu.core_type = #tpu.core_type<tc>, window_params = [{transform_indices = @transform_0, window_bounds = array<i64: 3, 128>}, {pipeline_mode = #tpu.pipeline_mode<synchronous>, transform_indices = @transform_1, window_bounds = array<i64: 32, 3>}, {pipeline_mode = #tpu.pipeline_mode<synchronous>, transform_indices = @transform_2, window_bounds = array<i64: 32, 1>}, {pipeline_mode = #tpu.pipeline_mode<synchronous>, transform_indices = @transform_3, window_bounds = array<i64: 6, 32>}, {pipeline_mode = #tpu.pipeline_mode<synchronous>, transform_indices = @transform_4, window_bounds = array<i64: 6, 1>}, {transform_indices = @transform_5, window_bounds = array<i64: 6, 128>}]} {
    %c0 = arith.constant 0 : index
    %c0_0 = arith.constant 0 : index
    %0 = vector.load %arg1[%c0, %c0_0] : memref<3x128xf32, #tpu.memory_space<vmem>>, vector<3x128xf32>
    %c0_1 = arith.constant 0 : index
    %c0_2 = arith.constant 0 : index
    %1 = vector.load %arg2[%c0_1, %c0_2] : memref<32x3xf32, #tpu.memory_space<vmem>>, vector<32x3xf32>
    %cst = arith.constant dense<0.000000e+00> : vector<32x128xf32>
    %2 = tpu.matmul %1, %0, %cst {dimension_numbers = #tpu.dot_dimension_numbers<[1], [0], [0], [1], [0, 0, 1, 1], [], []>} : vector<32x3xf32>, vector<3x128xf32>, vector<32x128xf32> -> vector<32x128xf32>
    %c0_3 = arith.constant 0 : index
    %c0_4 = arith.constant 0 : index
    %3 = vector.load %arg3[%c0_3, %c0_4] : memref<32x1xf32, #tpu.memory_space<vmem>>, vector<32x1xf32>
    %4 = vector.broadcast %3 : vector<32x1xf32> to vector<32x128xf32>
    %5 = arith.addf %2, %4 : vector<32x128xf32>
    %cst_5 = arith.constant 0.000000e+00 : f32
    %6 = vector.broadcast %cst_5 : f32 to vector<32x128xf32>
    %7 = arith.maximumf %5, %6 : vector<32x128xf32>
    %c0_6 = arith.constant 0 : index
    %c0_7 = arith.constant 0 : index
    %8 = vector.load %arg4[%c0_6, %c0_7] : memref<6x32xf32, #tpu.memory_space<vmem>>, vector<6x32xf32>
    %cst_8 = arith.constant dense<0.000000e+00> : vector<6x128xf32>
    %9 = tpu.matmul %8, %7, %cst_8 {dimension_numbers = #tpu.dot_dimension_numbers<[1], [0], [0], [1], [0, 0, 1, 1], [], []>} : vector<6x32xf32>, vector<32x128xf32>, vector<6x128xf32> -> vector<6x128xf32>
    %c0_9 = arith.constant 0 : index
    %c0_10 = arith.constant 0 : index
    %10 = vector.load %arg5[%c0_9, %c0_10] : memref<6x1xf32, #tpu.memory_space<vmem>>, vector<6x1xf32>
    %11 = vector.broadcast %10 : vector<6x1xf32> to vector<6x128xf32>
    %12 = arith.addf %9, %11 : vector<6x128xf32>
    %cst_11 = arith.constant dense<0xFF800000> : vector<128xf32>
    %13 = vector.multi_reduction <maximumf>, %12, %cst_11 [0] : vector<6x128xf32> to vector<128xf32>
    %14 = vector.shape_cast %13 : vector<128xf32> to vector<1x128xf32>
    %15 = vector.broadcast %14 : vector<1x128xf32> to vector<6x128xf32>
    %16 = arith.subf %12, %15 : vector<6x128xf32>
    %17 = math.exp %16 : vector<6x128xf32>
    %cst_12 = arith.constant dense<0.000000e+00> : vector<128xf32>
    %18 = vector.multi_reduction <add>, %17, %cst_12 [0] : vector<6x128xf32> to vector<128xf32>
    %19 = vector.shape_cast %18 : vector<128xf32> to vector<1x128xf32>
    %20 = vector.broadcast %19 : vector<1x128xf32> to vector<6x128xf32>
    %21 = arith.divf %17, %20 : vector<6x128xf32>
    %c0_13 = arith.constant 0 : index
    %c0_14 = arith.constant 0 : index
    %22 = vector.load %arg6[%c0_13, %c0_14] : memref<6x128xf32, #tpu.memory_space<vmem>>, vector<6x128xf32>
    tpu.vector_store %arg6[%c0_13, %c0_14], %21 {strides = array<i32>} : memref<6x128xf32, #tpu.memory_space<vmem>>, vector<6x128xf32>,
    return
  }
  func.func @transform_0(%arg0: i32) -> (i32, i32) {
    %c0_i32 = arith.constant 0 : i32
    %c0_i32_0 = arith.constant 0 : i32
    return %c0_i32, %arg0 : i32, i32
  }
  func.func @transform_1(%arg0: i32) -> (i32, i32) {
    %c0_i32 = arith.constant 0 : i32
    %c0_i32_0 = arith.constant 0 : i32
    %c0_i32_1 = arith.constant 0 : i32
    return %c0_i32, %c0_i32_0 : i32, i32
  }
  func.func @transform_2(%arg0: i32) -> (i32, i32) {
    %c0_i32 = arith.constant 0 : i32
    %c0_i32_0 = arith.constant 0 : i32
    %c0_i32_1 = arith.constant 0 : i32
    return %c0_i32, %c0_i32_0 : i32, i32
  }
  func.func @transform_3(%arg0: i32) -> (i32, i32) {
    %c0_i32 = arith.constant 0 : i32
    %c0_i32_0 = arith.constant 0 : i32
    %c0_i32_1 = arith.constant 0 : i32
    return %c0_i32, %c0_i32_0 : i32, i32
  }
  func.func @transform_4(%arg0: i32) -> (i32, i32) {
    %c0_i32 = arith.constant 0 : i32
    %c0_i32_0 = arith.constant 0 : i32
    %c0_i32_1 = arith.constant 0 : i32
    return %c0_i32, %c0_i32_0 : i32, i32
  }
  func.func @transform_5(%arg0: i32) -> (i32, i32) {
    %c0_i32 = arith.constant 0 : i32
    %c0_i32_0 = arith.constant 0 : i32
    return %c0_i32, %arg0 : i32, i32
  }
}

</mosaic_0001>

<llo_original>
// kernel: tpu_custom_call.1
$region0: #{tpu_custom_call.1}
  #allocation0 [shape = 'u32[]', space=smem, size = 0x4, offset = 0x4, fixed_abs, tag = 'smem constant byte address 0x4 - core index']
  #allocation1 [shape = 'u32[72,128]{1,0:T(1,128)}', space=vmem, size = 0x9000, scoped, tag = 'internal scratch']
  %s0 = inlined_call_operand.vmem [shape: f32[3,128], index: 0, kind: input, shape index: {}]
  %s1 = inlined_call_operand.vmem [shape: f32[32,3], index: 1, kind: input, shape index: {}]
  %s2 = inlined_call_operand.vmem [shape: f32[32,1], index: 2, kind: input, shape index: {}]
  %s3 = inlined_call_operand.vmem [shape: f32[6,32], index: 3, kind: input, shape index: {}]
  %s4 = inlined_call_operand.vmem [shape: f32[6,1], index: 4, kind: input, shape index: {}]
  %s5 = inlined_call_operand.hbm [shape: f32[6,128], index: 5, kind: output, shape index: {}]
  %s6 = sld [smem:[#allocation0]]
  $region30: #{tpu_custom_call.1} parent=0
    _
  %s8 = ssub.s32 1, %s6
  %s9 = scalar_select 0, %s8, %s6
  $region1: #{tpu_custom_call.1} parent=0
    #allocation2 [shape = 'u8[4096]{0}', space=vmem, size = 0x1000, scoped, tag = 'output window, operand 0, single buffered']
    #allocation3 [shape = 's32[1]{0}', space=sflag, size = 0x4, scoped, tag = 'scoped memory for tpu_custom_call.1']
    %10 = vsyncpa [#allocation3], 0
    // Predicated region
    $region2: #{tpu_custom_call.1} parent=1 // pred_check
      _
    $region3: #{tpu_custom_call.1} parent=1 // pred_check_branch
      %12 = sbr.rel (0) target = $region5
    $region4: #{tpu_custom_call.1} parent=1 // pred_region
      _
    $region5: #{tpu_custom_call.1} parent=1 // pred_fallthru
      _
    // Predicated region
    $region6: #{tpu_custom_call.1} parent=1 // pred_check
      _
    $region7: #{tpu_custom_call.1} parent=1 // pred_check_branch
      %14 = sbr.rel (0) target = $region9
    $region8: #{tpu_custom_call.1} parent=1 // pred_region
      _
    $region9: #{tpu_custom_call.1} parent=1 // pred_fallthru
      _
    // Predicated region
    $region10: #{tpu_custom_call.1} parent=1 // pred_check
      _
    $region11: #{tpu_custom_call.1} parent=1 // pred_check_branch
      %16 = sbr.rel (0) target = $region13
    $region12: #{tpu_custom_call.1} parent=1 // pred_region
      _
    $region13: #{tpu_custom_call.1} parent=1 // pred_fallthru
      _
    // Predicated region
    $region14: #{tpu_custom_call.1} parent=1 // pred_check
      _
    $region15: #{tpu_custom_call.1} parent=1 // pred_check_branch
      %18 = sbr.rel (0) target = $region17
    $region16: #{tpu_custom_call.1} parent=1 // pred_region
      _
    $region17: #{tpu_custom_call.1} parent=1 // pred_fallthru
      _
    // Predicated region
    $region18: #{tpu_custom_call.1} parent=1 // pred_check
      _
    $region19: #{tpu_custom_call.1} parent=1 // pred_check_branch
      %20 = sbr.rel (0) target = $region21
    $region20: #{tpu_custom_call.1} parent=1 // pred_region
      _
    $region21: #{tpu_custom_call.1} parent=1 // pred_fallthru
      _
    %v21 = vld [vmem:[%s0] sm:$0x7]
    %v22 = vld [vmem:[%s1] sm:$0xff]
    %v23 = vld [vmem:[%s1 + $0x8] sm:$0xff]
    %v24 = vld [vmem:[%s1 + $0x10] sm:$0xff]
    %v25 = vld [vmem:[%s1 + $0x18] sm:$0xff]
    %v26 = vld [vmem:[%s2] sm:$0xff]
    %v27 = vld [vmem:[%s2 + $0x8] sm:$0xff]
    %v28 = vld [vmem:[%s2 + $0x10] sm:$0xff]
    %v29 = vld [vmem:[%s2 + $0x18] sm:$0xff]
    %31 = vset.pattern.permute.xlu0 0
    %32 = vperm.xlu0 %31, %v26
    %v33 = vpop.permute.xlu0 %32
    %36 = vset.pattern.permute.xlu0 0
    %37 = vperm.xlu0 %36, %v27
    %v38 = vpop.permute.xlu0 %37
    %41 = vset.pattern.permute.xlu0 0
    %42 = vperm.xlu0 %41, %v28
    %v43 = vpop.permute.xlu0 %42
    %46 = vset.pattern.permute.xlu0 0
    %47 = vperm.xlu0 %46, %v29
    %v48 = vpop.permute.xlu0 %47
    %vm50 = vcmask 23552
    %v52 = vsel %vm50, %v22, 0
    %v55 = vsel %vm50, %v23, 0
    %v58 = vsel %vm50, %v24, 0
    %v61 = vsel %vm50, %v25, 0
    %vm63 = vcmask 1042432
    %v65 = vsel %vm63, %v21, 0
    %67 = vmatpush.msra.mxu0 0.0
    %68 = vmatpush.msra.mxu0 0.0
    %69 = vmatpush.msra.mxu0 0.0
    %70 = vmatpush.msra.mxu0 0.0
    %71 = vmatpush.msra.mxu0 0.0
    %72 = vmatpush.msra.mxu0 0.0
    %73 = vmatpush.msra.mxu0 0.0
    %74 = vmatpush.msra.mxu0 0.0
    %75 = vmatpush.msra.mxu0 0.0
    %76 = vmatpush.msra.mxu0 0.0
    %77 = vmatpush.msra.mxu0 0.0
    %78 = vmatpush.msra.mxu0 0.0
    %79 = vmatpush.msra.mxu0 0.0
    %80 = vmatpush.msra.mxu0 0.0
    %81 = vmatpush.msra.mxu0 0.0
    %82 = vmatpush.msra.mxu0 %v65
    %83 = vmatmul.f32.gmra.mxu0 %v52
    %v84 = vpop.f32.mrf.mxu0
    %v85 = vadd.f32 %v33, %v84
    %86 = vmatmul.f32.gmra.mxu0 %v55
    %v87 = vpop.f32.mrf.mxu0
    %v88 = vadd.f32 %v38, %v87
    %89 = vmatmul.f32.gmra.mxu0 %v58
    %v90 = vpop.f32.mrf.mxu0
    %v91 = vadd.f32 %v43, %v90
    %92 = vmatmul.f32.gmra.mxu0 %v61
    %v93 = vpop.f32.mrf.mxu0
    %v94 = vadd.f32 %v48, %v93
    %95 = vdwg.mxu0
    %v96 = vmax.f32 %v85, 0.0
    %v97 = vmax.f32 %v88, 0.0
    %v98 = vmax.f32 %v91, 0.0
    %v99 = vmax.f32 %v94, 0.0
    %v100 = vld [vmem:[%s3] sm:$0x3f]
    %v101 = vld [vmem:[%s4] sm:$0x3f]
    %103 = vset.pattern.permute.xlu0 0
    %104 = vperm.xlu0 %103, %v101
    %v105 = vpop.permute.xlu0 %104
    %vm107 = vcmask 261120
    %v109 = vsel %vm107, %v100, 0
    %111 = vmatpush.msra.mxu0 0.0
    %112 = vmatpush.msra.mxu0 0.0
    %113 = vmatpush.msra.mxu0 0.0
    %114 = vmatpush.msra.mxu0 0.0
    %115 = vmatpush.msra.mxu0 0.0
    %116 = vmatpush.msra.mxu0 0.0
    %117 = vmatpush.msra.mxu0 0.0
    %118 = vmatpush.msra.mxu0 0.0
    %119 = vmatpush.msra.mxu0 0.0
    %120 = vmatpush.msra.mxu0 0.0
    %121 = vmatpush.msra.mxu0 0.0
    %122 = vmatpush.msra.mxu0 0.0
    %123 = vmatpush.msra.mxu0 %v99
    %124 = vmatpush.msra.mxu0 %v98
    %125 = vmatpush.msra.mxu0 %v97
    %126 = vmatpush.msra.mxu0 %v96
    %127 = vmatmul.f32.gmra.mxu0 %v109
    %v128 = vpop.f32.mrf.mxu0
    %v129 = vadd.f32 %v105, %v128
    %130 = vdwg.mxu0
    %vm131 = vcmask 1045504
    %v132 = vsel %vm131, %v129, -inf
    %v133 = vrot.slane %v132, 4
    %v134 = vmax.f32 %v132, %v133
    %v135 = vrot.slane %v134, 2
    %v136 = vmax.f32 %v134, %v135
    %v137 = vrot.slane %v136, 1
    %v138 = vmax.f32 %v136, %v137
    %v139 = vsub.f32 %v129, %v138
    %v140 = vmul.f32 %v139, 1.442695
    %v141 = vpow.pop %v140
    %v142 = vsel %vm131, %v141, 0.0
    %v143 = vrot.slane %v142, 4
    %v144 = vadd.f32 %v142, %v143
    %v145 = vrot.slane %v144, 2
    %v146 = vadd.f32 %v144, %v145
    %v147 = vrot.slane %v146, 1
    %v148 = vadd.f32 %v146, %v147
    %v149 = vrcp.pop %v148
    %v150 = vmul.f32 %v148, %v149
    %v151 = vsub.f32 1.0, %v150
    %v152 = vmul.f32 %v149, %v151
    %v153 = vadd.f32 %v149, %v152
    %vm154 = vweird.f32 %v148
    %vm155 = vweird.f32 %v149
    %vm156 = vmor %vm154, %vm155
    %v157 = vsel %vm156, %v149, %v153
    %v158 = vand.u32 2147483647, %v148
    %vm159 = vcmp.eq.f32.partialorder %v158, 8.507059e+37
    %v160 = vand.u32 %v148, 2147483648
    %v161 = vor.u32 1.1754944e-38, %v160
    %v162 = vsel %vm159, %v161, %v157
    %v163 = vmul.f32 %v141, %v162
    %164 = vst [vmem:[#allocation2] sm:$0x3f] %v163
    // Predicated region
    $region22: #{tpu_custom_call.1} parent=1 // pred_check
      _
    $region23: #{tpu_custom_call.1} parent=1 // pred_check_branch
      %166 = sbr.rel (0) target = $region25
    $region24: #{tpu_custom_call.1} parent=1 // pred_region
      %168 = vsyncadd [#allocation3], 0
      %s170 = sshll.u32 [#allocation2], 4
      %s171 = int_to_ptr.vmem [resolvable:$true] %s170
      %s172 = sshll.u32 %s5, 4
      %s173 = int_to_ptr.hbm [resolvable:$true] %s172
      %175 = dma.vmem_to_hbm [thread:$0]  %s171, 128, %s173, [#allocation3]
    $region25: #{tpu_custom_call.1} parent=1 // pred_fallthru
      _
    // Predicated region
    $region26: #{tpu_custom_call.1} parent=1 // pred_check
      _
    $region27: #{tpu_custom_call.1} parent=1 // pred_check_branch
      %177 = sbr.rel (0) target = $region29
    $region28: #{tpu_custom_call.1} parent=1 // pred_region
      %179 = dma.done [#allocation3], 128
    $region29: #{tpu_custom_call.1} parent=1 // pred_fallthru
      _
    %180 = vsyncpa [#allocation3], 1

</llo_original>
